<compile_context>
chip_gen: v6e
topology: v6e:2x2x1
jax: 0.10.0
libtpu: 0.0.40
codegen_flags: <defaults>
</compile_context>

<pallas_src>
import jax
import jax.numpy as jnp
from jax.experimental import pallas as pl
from jax.experimental.pallas import tpu as pltpu


def _conv1x1_bn_relu_kernel(x_ref, w_ref, b_ref, o_ref):
    # x_ref: (C_in, T) native-layout lane tile (batch dim squeezed)
    # w_ref: (C_mid, C_in) bf16 (BN scale folded in), VMEM-resident
    # b_ref: (C_mid, 1) f32 (BN shift),               VMEM-resident
    # o_ref: (C_mid, T) out tile (bf16 fast path)
    x_bf16 = x_ref[...].astype(jnp.bfloat16)
    y = jnp.dot(w_ref[...], x_bf16, preferred_element_type=jnp.float32)  # (C_mid, T)
    y = y + b_ref[...]                       # broadcast bias over lanes
    o_ref[...] = jnp.maximum(y, 0.0).astype(o_ref.dtype)


def _pick_lane_tile(hw, batch, bytes_per_col, *, max_tile=8192,
                    vmem_budget=12 * 1024 * 1024, target_steps=8):
    """Largest 128-multiple lane tile that fits the VMEM budget, shrunk (never
    below 512) until the grid has enough steps for both v7x TensorCores."""
    if hw <= 128:
        return hw                                  # single full (possibly sub-128) block
    cap = min(max_tile, vmem_budget // max(bytes_per_col, 1), hw)
    cap = max(128, (cap // 128) * 128)
    t = cap
    while t > 512 and batch * pl.cdiv(hw, t) < target_steps:
        t -= 128
    # Always guarantee at least 2 grid steps when the shape allows it at all.
    if batch * pl.cdiv(hw, t) < 2 and t > 128:
        t = max(128, ((hw + 1) // 2 // 128) * 128)
    return t


def conv1x1_bn_relu(x3, w_bf16, bias_col, *, t_hw, out_dtype):
    """x3: (B, C_in, HW) native-NCHW rows.  Partial last lane block is allowed."""
    B, C_in, HW = x3.shape
    C_mid = w_bf16.shape[0]
    grid = (B, pl.cdiv(HW, t_hw))

    flops = 2 * B * HW * C_mid * C_in
    bytes_accessed = (x3.size * x3.dtype.itemsize
                      + w_bf16.size * 2
                      + bias_col.size * 4
                      + B * C_mid * HW * jnp.dtype(out_dtype).itemsize)

    return pl.pallas_call(
        _conv1x1_bn_relu_kernel,
        out_shape=jax.ShapeDtypeStruct((B, C_mid, HW), out_dtype),
        grid_spec=pltpu.PrefetchScalarGridSpec(
            num_scalar_prefetch=0,
            grid=grid,
            in_specs=[
                pl.BlockSpec((pl.Squeezed(), C_in, t_hw), lambda b, j: (b, 0, j)),
                # constant index_maps -> blocks stay VMEM-resident, no per-step re-DMA
                pl.BlockSpec((C_mid, C_in), lambda b, j: (0, 0)),
                pl.BlockSpec((C_mid, 1), lambda b, j: (0, 0)),
            ],
            out_specs=pl.BlockSpec((pl.Squeezed(), C_mid, t_hw), lambda b, j: (b, 0, j)),
        ),
        compiler_params=pltpu.CompilerParams(
            dimension_semantics=("parallel", "parallel")),   # megacore on v7x
        cost_estimate=pl.CostEstimate(
            flops=flops, transcendentals=0, bytes_accessed=bytes_accessed),
    )(x3, w_bf16, bias_col)


def pixel_shuffle_v3(x, conv_w, bn_gamma, bn_beta, bn_mean, bn_var,
                     *, scale=2, eps=1e-5, max_tile=8192, out_dtype=jnp.bfloat16):
    """Forward of PixelShuffle_v3 (eval-mode BN).

    x: NCHW (B, C_in, H, W); conv_w: (C_mid, C_in) from Conv2d weight (C_mid, C_in, 1, 1).
    out_dtype defaults to bfloat16 (fast path); pass jnp.float32 to opt out.
    """
    B, C_in, H, W = x.shape
    C_mid = conv_w.shape[0]
    assert C_mid % (scale * scale) == 0
    C_out = C_mid // (scale * scale)

    # Fold BatchNorm (eval-mode) into the conv: scale -> weight rows, shift -> bias.
    inv_std = 1.0 / jnp.sqrt(bn_var.astype(jnp.float32) + eps)
    s = bn_gamma.astype(jnp.float32) * inv_std                                  # (C_mid,)
    b = bn_beta.astype(jnp.float32) - bn_mean.astype(jnp.float32) * s           # (C_mid,)
    w_eff = (conv_w.astype(jnp.float32) * s[:, None]).astype(jnp.bfloat16)      # (C_mid, C_in)
    b_col = b.reshape(C_mid, 1)

    # Lane tile along H*W: VMEM-budget and megacore aware.
    HW = H * W
    in_bytes = jnp.dtype(x.dtype).itemsize
    out_bytes = jnp.dtype(out_dtype).itemsize
    bytes_per_col = (2 * C_in * in_bytes       # double-buffered input blocks
                     + 2 * C_mid * out_bytes   # double-buffered output blocks
                     + 4 * C_mid               # live f32 accumulator
                     + 2 * C_in)               # bf16 cast of the input tile
    t_hw = _pick_lane_tile(HW, B, bytes_per_col, max_tile=max_tile)

    x3 = x.reshape(B, C_in, HW)
    y3 = conv1x1_bn_relu(x3, w_eff, b_col, t_hw=t_hw, out_dtype=out_dtype)

    # Pixel-shuffle (v3 ordering): out[b, c3, h*scale + s2, w*scale + s1]
    #   = conv_out[b, s1*scale*C_out + s2*C_out + c3, h, w]
    # Single reshape -> transpose -> reshape (one XLA transpose copy, bf16 by default).
    y = y3.reshape(B, scale, scale, C_out, H, W)      # (b, s1, s2, c3, h, w)
    y = jnp.transpose(y, (0, 3, 4, 2, 5, 1))          # (b, c3, h, s2, w, s1)
    return y.reshape(B, C_out, H * scale, W * scale)


def ref_forward(x, conv_w, gamma, beta, mean, var, *, scale=2, eps=1e-5):
    """Pure-JAX transcription of the PyTorch forward (eval-mode BN), all in f32."""
    y = jnp.einsum('bchw,oc->bohw', x, conv_w)
    y = (y - mean[None, :, None, None]) * (gamma / jnp.sqrt(var + eps))[None, :, None, None] \
        + beta[None, :, None, None]
    y = jnp.maximum(y, 0.0)
    b, c, h, w = y.shape
    y = jnp.transpose(y, (0, 2, 3, 1)).reshape(b, h, w * scale, c // scale)
    y = jnp.transpose(y, (0, 2, 1, 3)).reshape(b, w * scale, h * scale, c // scale // scale)
    y = jnp.transpose(y, (0, 3, 2, 1))
    return y


def _run_case(key, B, C_in, H, W, out_channels, scale, out_dtype, tol):
    C_mid = out_channels * scale * scale
    kx, kw, kg, kb, km, kv = jax.random.split(key, 6)
    x = jax.random.normal(kx, (B, C_in, H, W), dtype=jnp.float32)
    conv_w = jax.random.normal(kw, (C_mid, C_in), dtype=jnp.float32) * 0.1
    bn_gamma = 1.0 + 0.1 * jax.random.normal(kg, (C_mid,), dtype=jnp.float32)
    bn_beta = 0.1 * jax.random.normal(kb, (C_mid,), dtype=jnp.float32)
    bn_mean = 0.1 * jax.random.normal(km, (C_mid,), dtype=jnp.float32)
    bn_var = jnp.abs(jax.random.normal(kv, (C_mid,), dtype=jnp.float32)) + 0.5

    out = pixel_shuffle_v3(x, conv_w, bn_gamma, bn_beta, bn_mean, bn_var,
                           scale=scale, out_dtype=out_dtype)
    out = jax.block_until_ready(out)

    ref = ref_forward(x, conv_w, bn_gamma, bn_beta, bn_mean, bn_var, scale=scale)
    assert out.shape == (B, out_channels, H * scale, W * scale), out.shape
    assert out.dtype == jnp.dtype(out_dtype), out.dtype
    err = float(jnp.max(jnp.abs(out.astype(jnp.float32) - ref)))
    # bf16 MXU operands (and optionally bf16 output rounding) vs f32 reference:
    # loose-ish tolerance, still far below the O(0.5) magnitude any
    # permutation / indexing bug would produce.
    assert err < tol, err


if __name__ == "__main__":
    key = jax.random.PRNGKey(0)
    k1, k2 = jax.random.split(key, 2)

    # Main case: bf16 fast path, evenly tiled H*W (256 -> one 256-lane tile per batch).
    _run_case(k1, B=2, C_in=16, H=16, W=16, out_channels=8, scale=2,
              out_dtype=jnp.bfloat16, tol=2.5e-2)

    # Ragged case: H*W = 60 exercises the partial-last-block path (no pad/slice),
    # with the f32 output opt-out.
    _run_case(k2, B=2, C_in=16, H=6, W=10, out_channels=8, scale=2,
              out_dtype=jnp.float32, tol=2e-2)

    print("KERNEL_OK")
</pallas_src>

<mosaic_0001>
module attributes {stable_mosaic.version = 11 : i64} {
  func.func @_conv1x1_bn_relu_kernel(%arg0: i32, %arg1: i32, %arg2: memref<1x16x256xf32, #tpu.memory_space<vmem>>, %arg3: memref<32x16xbf16, #tpu.memory_space<vmem>>, %arg4: memref<32x1xf32, #tpu.memory_space<vmem>>, %arg5: memref<1x32x256xbf16, #tpu.memory_space<vmem>>) attributes {dimension_semantics = [#tpu.dimension_semantics<parallel>, #tpu.dimension_semantics<parallel>], iteration_bounds = array<i64: 2, 1>, scalar_prefetch = 0 : i64, scratch_operands = 0 : i64, tpu.core_type = #tpu.core_type<tc>, window_params = [{transform_indices = @transform_0, window_bounds = array<i64: 1, 16, 256>}, {pipeline_mode = #tpu.pipeline_mode<synchronous>, transform_indices = @transform_1, window_bounds = array<i64: 32, 16>}, {pipeline_mode = #tpu.pipeline_mode<synchronous>, transform_indices = @transform_2, window_bounds = array<i64: 32, 1>}, {transform_indices = @transform_3, window_bounds = array<i64: 1, 32, 256>}]} {
    %c0 = arith.constant 0 : index
    %c0_0 = arith.constant 0 : index
    %c0_1 = arith.constant 0 : index
    %0 = vector.load %arg2[%c0, %c0_0, %c0_1] : memref<1x16x256xf32, #tpu.memory_space<vmem>>, vector<1x16x256xf32>
    %1 = vector.shape_cast %0 : vector<1x16x256xf32> to vector<16x256xf32>
    %2 = arith.truncf %1 : vector<16x256xf32> to vector<16x256xbf16>
    %c0_2 = arith.constant 0 : index
    %c0_3 = arith.constant 0 : index
    %3 = vector.load %arg3[%c0_2, %c0_3] : memref<32x16xbf16, #tpu.memory_space<vmem>>, vector<32x16xbf16>
    %cst = arith.constant dense<0.000000e+00> : vector<32x256xf32>
    %4 = tpu.matmul %3, %2, %cst {dimension_numbers = #tpu.dot_dimension_numbers<[1], [0], [0], [1], [0, 0, 1, 1], [], []>} : vector<32x16xbf16>, vector<16x256xbf16>, vector<32x256xf32> -> vector<32x256xf32>
    %c0_4 = arith.constant 0 : index
    %c0_5 = arith.constant 0 : index
    %5 = vector.load %arg4[%c0_4, %c0_5] : memref<32x1xf32, #tpu.memory_space<vmem>>, vector<32x1xf32>
    %6 = vector.broadcast %5 : vector<32x1xf32> to vector<32x256xf32>
    %7 = arith.addf %4, %6 : vector<32x256xf32>
    %cst_6 = arith.constant 0.000000e+00 : f32
    %8 = vector.broadcast %cst_6 : f32 to vector<32x256xf32>
    %9 = arith.maximumf %7, %8 : vector<32x256xf32>
    %10 = arith.truncf %9 : vector<32x256xf32> to vector<32x256xbf16>
    %c0_7 = arith.constant 0 : index
    %c0_8 = arith.constant 0 : index
    %c0_9 = arith.constant 0 : index
    %11 = vector.load %arg5[%c0_7, %c0_8, %c0_9] : memref<1x32x256xbf16, #tpu.memory_space<vmem>>, vector<1x32x256xbf16>
    %12 = vector.shape_cast %11 : vector<1x32x256xbf16> to vector<32x256xbf16>
    %13 = vector.shape_cast %10 : vector<32x256xbf16> to vector<1x32x256xbf16>
    tpu.vector_store %arg5[%c0_7, %c0_8, %c0_9], %13 {strides = array<i32>} : memref<1x32x256xbf16, #tpu.memory_space<vmem>>, vector<1x32x256xbf16>,
    return
  }
  func.func @transform_0(%arg0: i32, %arg1: i32) -> (i32, i32, i32) {
    %c0_i32 = arith.constant 0 : i32
    %c0_i32_0 = arith.constant 0 : i32
    return %arg0, %c0_i32, %arg1 : i32, i32, i32
  }
  func.func @transform_1(%arg0: i32, %arg1: i32) -> (i32, i32) {
    %c0_i32 = arith.constant 0 : i32
    %c0_i32_0 = arith.constant 0 : i32
    %c0_i32_1 = arith.constant 0 : i32
    return %c0_i32, %c0_i32_0 : i32, i32
  }
  func.func @transform_2(%arg0: i32, %arg1: i32) -> (i32, i32) {
    %c0_i32 = arith.constant 0 : i32
    %c0_i32_0 = arith.constant 0 : i32
    %c0_i32_1 = arith.constant 0 : i32
    return %c0_i32, %c0_i32_0 : i32, i32
  }
  func.func @transform_3(%arg0: i32, %arg1: i32) -> (i32, i32, i32) {
    %c0_i32 = arith.constant 0 : i32
    %c0_i32_0 = arith.constant 0 : i32
    return %arg0, %c0_i32, %arg1 : i32, i32, i32
  }
}

</mosaic_0001>

<llo_original>
// kernel: tpu_custom_call.1
$region0: #{tpu_custom_call.1}
  #allocation0 [shape = 'u32[]', space=smem, size = 0x4, offset = 0x4, fixed_abs, tag = 'smem constant byte address 0x4 - core index']
  #allocation1 [shape = 'u32[144,128]{1,0:T(1,128)}', space=vmem, size = 0x12000, scoped, tag = 'internal scratch']
  %s0 = inlined_call_operand.hbm [shape: f32[2,16,256], index: 0, kind: input, shape index: {}]
  %s1 = inlined_call_operand.vmem [shape: bf16[32,16], index: 1, kind: input, shape index: {}]
  %s2 = inlined_call_operand.vmem [shape: f32[32,1], index: 2, kind: input, shape index: {}]
  %s3 = inlined_call_operand.hbm [shape: bf16[2,32,256], index: 3, kind: output, shape index: {}]
  %s4 = sld [smem:[#allocation0]]
  $region49: #{tpu_custom_call.1} parent=0
    _
  %s6 = ssub.s32 1, %s4
  %s7 = scalar_select 0, %s6, %s4
  $region1: #{tpu_custom_call.1} parent=0
    #allocation2 [shape = 'u8[32768]{0}', space=vmem, size = 0x8000, scoped, tag = 'input window, operand 0']
    #allocation3 [shape = 's32[2]{0}', space=sflag, size = 0x8, scoped, tag = 'scoped memory for tpu_custom_call.1']
    #allocation4 [shape = 's32[2]{0}', space=sflag, size = 0x8, scoped, tag = 'scoped memory for tpu_custom_call.1']
    #allocation5 [shape = 'u8[32768]{0}', space=vmem, size = 0x8000, scoped, tag = 'output window, operand 0']
    %8 = vsyncpa [#allocation3], 0
    %s9 = scalar_lea.sflag [#allocation3], 1
    %10 = vsyncpa %s9, 0
    %11 = vsyncpa [#allocation4], 0
    %s12 = scalar_lea.sflag [#allocation4], 1
    %13 = vsyncpa %s12, 0
    loop: start=0, step=1, limit=4
    $region2: #{tpu_custom_call.1} parent=1 // loop_pre_header
      _
    $region3: #{tpu_custom_call.1} parent=1 // loop_header
      %s15 = sphi 0, %s19
      %p16 = scmp.ge.s32.totalorder %s15, 4
      %s22 = sphi 0, %s34
      %s23 = sphi 0, %s30
      %s24 = sphi 0, %s22
      %s25 = sphi 0, %s23
      %s26 = sphi 0, %s24
      %s27 = sphi 0, %s25
      %s39 = sphi 0, %s41
      %s42 = sphi 0, %s39
      %s43 = sphi 0, %s42
      %s59 = sphi 0, %s43
      %s63 = sphi 0, %s63
      %s65 = sphi 0, %s63
      %s66 = sphi 0, %s65
      %s80 = sphi 0, %s66
      %s84 = sphi 0, %s84
      %s86 = sphi 0, %s84
      %s87 = sphi 0, %s86
      %s101 = sphi 0, %s87
      %s109 = sphi 0, %s111
      %s112 = sphi 0, %s109
      %s113 = sphi 0, %s112
      %s129 = sphi 0, %s113
    $region4: #{tpu_custom_call.1} parent=1 // loop_header_branch
      %18 = sbr.rel (%p16) target = $region8
    $region5: #{tpu_custom_call.1} parent=1 // loop_body
      %s20 = ssub.s32 %s15, 1
      %s21 = ssub.s32 %s15, 2
      %s28 = sadd.s32 1, %s23
      %p29 = scmp.ge.s32.totalorder %s28, 1
      %s30 = scalar_select %p29, 0, %s28
      %s31 = sadd.s32 1, %s22
      %s32 = scalar_select %p29, %s31, %s22
      %p33 = scmp.ge.s32.totalorder %s32, 2
      %s34 = scalar_select %p33, 0, %s32
      %s35 = ssub.s32 %s22, %s34
      %s36 = ssub.s32 %s23, %s30
      %s37 = sor.u32 %s35, %s36
      %p38 = scmp.eq.s32.totalorder %s37, 0
      %s40 = sadd.s32 %s39, 1
      %s41 = scalar_select %p38, %s39, %s40
      %p44 = pneg %p38
      %p45 = scmp.eq.s32.totalorder %s15, 1
      %p46 = por %p44, %p45
      %p47 = scmp.ne.s32.totalorder %s39, %s42
      %p48 = scmp.eq.s32.totalorder %s15, 0
      %p49 = por %p47, %p48
      %p50 = scmp.ne.s32.totalorder %s39, %s42
      %p51 = scmp.eq.s32.totalorder %s20, 1
      %p52 = por %p50, %p51
      %p53 = scmp.ne.s32.totalorder %s42, %s43
      %p54 = scmp.eq.s32.totalorder %s20, 0
      %p55 = por %p53, %p54
      %p56 = scmp.ne.s32.totalorder %s42, %s43
      %p57 = scmp.eq.s32.totalorder %s21, 1
      %p58 = por %p56, %p57
      %p60 = scmp.ne.s32.totalorder %s43, %s59
      %p61 = scmp.eq.s32.totalorder %s21, 0
      %p62 = por %p60, %p61
      %s64 = sadd.s32 %s63, 1
      %p67 = scmp.eq.s32.totalorder %s15, 1
      %p68 = scmp.ne.s32.totalorder %s63, %s65
      %p69 = scmp.eq.s32.totalorder %s15, 0
      %p70 = por %p68, %p69
      %p71 = scmp.ne.s32.totalorder %s63, %s65
      %p72 = scmp.eq.s32.totalorder %s20, 1
      %p73 = por %p71, %p72
      %p74 = scmp.ne.s32.totalorder %s65, %s66
      %p75 = scmp.eq.s32.totalorder %s20, 0
      %p76 = por %p74, %p75
      %p77 = scmp.ne.s32.totalorder %s65, %s66
      %p78 = scmp.eq.s32.totalorder %s21, 1
      %p79 = por %p77, %p78
      %p81 = scmp.ne.s32.totalorder %s66, %s80
      %p82 = scmp.eq.s32.totalorder %s21, 0
      %p83 = por %p81, %p82
      %s85 = sadd.s32 %s84, 1
      %p88 = scmp.eq.s32.totalorder %s15, 1
      %p89 = scmp.ne.s32.totalorder %s84, %s86
      %p90 = scmp.eq.s32.totalorder %s15, 0
      %p91 = por %p89, %p90
      %p92 = scmp.ne.s32.totalorder %s84, %s86
      %p93 = scmp.eq.s32.totalorder %s20, 1
      %p94 = por %p92, %p93
      %p95 = scmp.ne.s32.totalorder %s86, %s87
      %p96 = scmp.eq.s32.totalorder %s20, 0
      %p97 = por %p95, %p96
      %p98 = scmp.ne.s32.totalorder %s86, %s87
      %p99 = scmp.eq.s32.totalorder %s21, 1
      %p100 = por %p98, %p99
      %p102 = scmp.ne.s32.totalorder %s87, %s101
      %p103 = scmp.eq.s32.totalorder %s21, 0
      %p104 = por %p102, %p103
      %s105 = ssub.s32 %s22, %s34
      %s106 = ssub.s32 %s23, %s30
      %s107 = sor.u32 %s105, %s106
      %p108 = scmp.eq.s32.totalorder %s107, 0
      %s110 = sadd.s32 %s109, 1
      %s111 = scalar_select %p108, %s109, %s110
      %p114 = pneg %p108
      %p115 = scmp.eq.s32.totalorder %s15, 1
      %p116 = por %p114, %p115
      %p117 = scmp.ne.s32.totalorder %s109, %s112
      %p118 = scmp.eq.s32.totalorder %s15, 0
      %p119 = por %p117, %p118
      %p120 = scmp.ne.s32.totalorder %s109, %s112
      %p121 = scmp.eq.s32.totalorder %s20, 1
      %p122 = por %p120, %p121
      %p123 = scmp.ne.s32.totalorder %s112, %s113
      %p124 = scmp.eq.s32.totalorder %s20, 0
      %p125 = por %p123, %p124
      %p126 = scmp.ne.s32.totalorder %s112, %s113
      %p127 = scmp.eq.s32.totalorder %s21, 1
      %p128 = por %p126, %p127
      %p130 = scmp.ne.s32.totalorder %s113, %s129
      %p131 = scmp.eq.s32.totalorder %s21, 0
      %p132 = por %p130, %p131
      %p133 = scmp.le.s32.totalorder 1, %s15
      %p134 = scmp.lt.s32.totalorder %s15, 3
      %p135 = pnand %p133, %p134
      %p136 = pneg %p135
      // Predicated region
      $region9: #{tpu_custom_call.1} parent=5 // pred_check
        _
      $region10: #{tpu_custom_call.1} parent=5 // pred_check_branch
        %138 = sbr.rel (%p135) target = $region12
      $region11: #{tpu_custom_call.1} parent=5 // pred_region
        %s139 = ssub.s32 %s15, 1
        // Predicated region
        $region13: #{tpu_custom_call.1} parent=11 // pred_check
          %p140 = pneg %p76
        $region14: #{tpu_custom_call.1} parent=11 // pred_check_branch
          %142 = sbr.rel (%p140) target = $region16
        $region15: #{tpu_custom_call.1} parent=11 // pred_region
          _
        $region16: #{tpu_custom_call.1} parent=11 // pred_fallthru
          _
        // Predicated region
        $region17: #{tpu_custom_call.1} parent=11 // pred_check
          %p143 = pneg %p97
        $region18: #{tpu_custom_call.1} parent=11 // pred_check_branch
          %145 = sbr.rel (%p143) target = $region20
        $region19: #{tpu_custom_call.1} parent=11 // pred_region
          _
        $region20: #{tpu_custom_call.1} parent=11 // pred_fallthru
          _
      $region12: #{tpu_custom_call.1} parent=5 // pred_fallthru
        _
      %p146 = scmp.lt.s32.totalorder %s15, 2
      // Predicated region
      $region21: #{tpu_custom_call.1} parent=5 // pred_check
        %p147 = pneg %p146
      $region22: #{tpu_custom_call.1} parent=5 // pred_check_branch
        %149 = sbr.rel (%p147) target = $region24
      $region23: #{tpu_custom_call.1} parent=5 // pred_region
        // Predicated region
        $region25: #{tpu_custom_call.1} parent=23 // pred_check
          %p150 = pneg %p49
        $region26: #{tpu_custom_call.1} parent=23 // pred_check_branch
          %152 = sbr.rel (%p150) target = $region28
        $region27: #{tpu_custom_call.1} parent=23 // pred_region
          %s153 = sand.u32 %s39, 1
          %s154 = scalar_lea.sflag [#allocation3], %s153
          %s155 = sand.u32 %s39, 1
          %s156 = smul.addr %s155, 32
          %s157 = scalar_lea.vmem [#allocation2], %s156
          %s158 = smul.u32 2, %s23
          %s160 = ssub.s32 512, 512
          %161 = vsyncadd %s154, %s160
          %s162 = smul.addr %s22, 4
          %s163 = sadd.s32 %s158, %s162
          %s164 = smul.addr %s163, 128
          %s165 = scalar_lea.hbm %s0, %s164
          %s166 = sshll.u32 %s157, 4
          %s167 = int_to_ptr.vmem [resolvable:$true] %s166
          %172 = dma.hbm_to_vmem [thread:$0]  %s165, 512, %s167, %s154, 256, 256, 16
        $region28: #{tpu_custom_call.1} parent=23 // pred_fallthru
          _
      $region24: #{tpu_custom_call.1} parent=5 // pred_fallthru
        _
      %p173 = scmp.le.s32.totalorder 1, %s15
      %p174 = scmp.lt.s32.totalorder %s15, 3
      %p175 = pnand %p173, %p174
      %p176 = pneg %p175
      // Predicated region
      $region29: #{tpu_custom_call.1} parent=5 // pred_check
        _
      $region30: #{tpu_custom_call.1} parent=5 // pred_check_branch
        %178 = sbr.rel (%p175) target = $region32
      $region31: #{tpu_custom_call.1} parent=5 // pred_region
        %s179 = ssub.s32 %s15, 1
        %s180 = sand.u32 %s42, 1
        %s181 = scalar_lea.sflag [#allocation3], %s180
        %s182 = sand.u32 %s42, 1
        %s183 = smul.addr %s182, 32
        %s184 = scalar_lea.vmem [#allocation2], %s183
        // Predicated region
        $region33: #{tpu_custom_call.1} parent=31 // pred_check
          %p185 = pneg %p55
        $region34: #{tpu_custom_call.1} parent=31 // pred_check_branch
          %187 = sbr.rel (%p185) target = $region36
        $region35: #{tpu_custom_call.1} parent=31 // pred_region
          %188 = dma.done %s181, 512
        $region36: #{tpu_custom_call.1} parent=31 // pred_fallthru
          _
        %s189 = sand.u32 %s42, 1
        %s190 = scalar_lea.sflag [#allocation3], %s189
        %s191 = sand.u32 %s42, 1
        %s192 = smul.addr %s191, 32
        %s193 = scalar_lea.vmem [#allocation2], %s192
        %p194 = pneg %p55
        %p195 = pneg %p52
        %p196 = pneg %p76
        %p197 = pneg %p73
        %p198 = pneg %p97
        %p199 = pneg %p94
        %p200 = pneg %p125
        %p201 = pneg %p122
        %s202 = sand.u32 %s112, 1
        %s203 = scalar_lea.sflag [#allocation4], %s202
        %s204 = sand.u32 %s112, 1
        %s205 = smul.addr %s204, 32
        %s206 = scalar_lea.vmem [#allocation5], %s205
        %s207 = smul.u32 2, %s25
        %s208 = smul.u32 2, %s25
        %v210 = vld [vmem:[%s184] sm:$0xff]
        %v211 = vld [vmem:[%s184 + $0x8] sm:$0xff]
        %v212 = vld [vmem:[%s184 + $0x10] sm:$0xff]
        %v213 = vld [vmem:[%s184 + $0x18] sm:$0xff]
        %v214 = vpack.c.bf16 %v212, %v210
        %v215 = vpack.c.bf16 %v213, %v211
        %v216 = vld [vmem:[%s1] sm:$0xf]
        %v217 = vld [vmem:[%s1 + $0x4] sm:$0xf]
        %v218 = vld [vmem:[%s1 + $0x8] sm:$0xf]
        %v219 = vld [vmem:[%s1 + $0xc] sm:$0xf]
        %v220 = vld [vmem:[%s2] sm:$0xff]
        %v221 = vld [vmem:[%s2 + $0x8] sm:$0xff]
        %v222 = vld [vmem:[%s2 + $0x10] sm:$0xff]
        %v223 = vld [vmem:[%s2 + $0x18] sm:$0xff]
        %225 = vset.pattern.permute.xlu0 0
        %226 = vperm.xlu0 %225, %v220
        %v227 = vpop.permute.xlu0 %226
        %230 = vset.pattern.permute.xlu0 0
        %231 = vperm.xlu0 %230, %v221
        %v232 = vpop.permute.xlu0 %231
        %235 = vset.pattern.permute.xlu0 0
        %236 = vperm.xlu0 %235, %v222
        %v237 = vpop.permute.xlu0 %236
        %240 = vset.pattern.permute.xlu0 0
        %241 = vperm.xlu0 %240, %v223
        %v242 = vpop.permute.xlu0 %241
        %v248 = vunpack.c.l.b16 %v216
        %v249 = vunpack.c.l.b16 %v217
        %v250 = vunpack.c.l.b16 %v218
        %v251 = vunpack.c.l.b16 %v219
        %v252 = vpack.c.b16 %v249, %v248
        %v253 = vpack.c.b16 %v251, %v250
        %vm254 = vcmask 130048
        %v256 = vsel %vm254, %v252, 0
        %v259 = vsel %vm254, %v253, 0
        %261 = vmatprep.subr.bf16.mxu0 0
        %262 = vmatpush1.bf16.msra.mxu0 0
        %263 = vmatprep.subr.bf16.mxu0 0
        %264 = vmatpush1.bf16.msra.mxu0 0
        %265 = vmatprep.subr.bf16.mxu0 0
        %266 = vmatpush1.bf16.msra.mxu0 0
        %267 = vmatprep.subr.bf16.mxu0 0
        %268 = vmatpush1.bf16.msra.mxu0 0
        %269 = vmatprep.subr.bf16.mxu0 0
        %270 = vmatpush1.bf16.msra.mxu0 0
        %271 = vmatprep.subr.bf16.mxu0 0
        %272 = vmatpush1.bf16.msra.mxu0 0
        %273 = vmatprep.subr.bf16.mxu0 0
        %274 = vmatpush1.bf16.msra.mxu0 0
        %275 = vmatprep.subr.bf16.mxu0 %v215
        %276 = vmatpush1.bf16.msra.mxu0 %v214
        %277 = vmatprep.subr.bf16.mxu0 0
        %278 = vmatpush2.bf16.msra.mxu0 0
        %279 = vmatprep.subr.bf16.mxu0 0
        %280 = vmatpush2.bf16.msra.mxu0 0
        %281 = vmatprep.subr.bf16.mxu0 0
        %282 = vmatpush2.bf16.msra.mxu0 0
        %283 = vmatprep.subr.bf16.mxu0 0
        %284 = vmatpush2.bf16.msra.mxu0 0
        %285 = vmatprep.subr.bf16.mxu0 0
        %286 = vmatpush2.bf16.msra.mxu0 0
        %287 = vmatprep.subr.bf16.mxu0 0
        %288 = vmatpush2.bf16.msra.mxu0 0
        %289 = vmatprep.subr.bf16.mxu0 0
        %290 = vmatpush2.bf16.msra.mxu0 0
        %291 = vmatprep.subr.bf16.mxu0 0
        %292 = vmatpush2.bf16.msra.mxu0 0
        %293 = vmatprep.mubr.bf16.mxu0 0
        %294 = vmatmul.mubr.bf16.gmra.mxu0 %v256
        %v295 = vpop.f32.mrf.mxu0
        %v296 = vadd.f32 %v227, %v295
        %v297 = vpop.f32.mrf.mxu0
        %v298 = vadd.f32 %v227, %v297
        %v299 = vpop.f32.mrf.mxu0
        %v300 = vadd.f32 %v232, %v299
        %v301 = vpop.f32.mrf.mxu0
        %v302 = vadd.f32 %v232, %v301
        %303 = vmatprep.mubr.bf16.mxu0 0
        %304 = vmatmul.mubr.bf16.gmra.mxu0 %v259
        %v305 = vpop.f32.mrf.mxu0
        %v306 = vadd.f32 %v237, %v305
        %v307 = vpop.f32.mrf.mxu0
        %v308 = vadd.f32 %v237, %v307
        %v309 = vpop.f32.mrf.mxu0
        %v310 = vadd.f32 %v242, %v309
        %v311 = vpop.f32.mrf.mxu0
        %v312 = vadd.f32 %v242, %v311
        %313 = vdwg.mxu0
        %v314 = vmax.f32 %v296, 0.0
        %v315 = vmax.f32 %v298, 0.0
        %v316 = vmax.f32 %v300, 0.0
        %v317 = vmax.f32 %v302, 0.0
        %v318 = vmax.f32 %v306, 0.0
        %v319 = vmax.f32 %v308, 0.0
        %v320 = vmax.f32 %v310, 0.0
        %v321 = vmax.f32 %v312, 0.0
        %v322 = vpack.c.bf16 %v316, %v314
        %v323 = vpack.c.bf16 %v317, %v315
        %v324 = vpack.c.bf16 %v320, %v318
        %v325 = vpack.c.bf16 %v321, %v319
        %v330 = vunpack.c.l.b16 %v322
        %v331 = vunpack.c.l.b16 %v323
        %v332 = vunpack.c.h.b16 %v322
        %v333 = vunpack.c.h.b16 %v323
        %v334 = vunpack.c.l.b16 %v324
        %v335 = vunpack.c.l.b16 %v325
        %v336 = vunpack.c.h.b16 %v324
        %v337 = vunpack.c.h.b16 %v325
        %v338 = vpack.c.b16 %v331, %v330
        %v339 = vpack.c.b16 %v333, %v332
        %v340 = vpack.c.b16 %v335, %v334
        %v341 = vpack.c.b16 %v337, %v336
        %346 = vst [vmem:[%s206] sm:$0xff] %v338
        %347 = vst [vmem:[%s206 + $0x8] sm:$0xff] %v339
        %348 = vst [vmem:[%s206 + $0x10] sm:$0xff] %v340
        %349 = vst [vmem:[%s206 + $0x18] sm:$0xff] %v341
        %s350 = sand.u32 %s112, 1
        %s351 = scalar_lea.sflag [#allocation4], %s350
        %s352 = sand.u32 %s112, 1
        %s353 = smul.addr %s352, 32
        %s354 = scalar_lea.vmem [#allocation5], %s353
        // Predicated region
        $region37: #{tpu_custom_call.1} parent=31 // pred_check
          %p355 = pneg %p122
        $region38: #{tpu_custom_call.1} parent=31 // pred_check_branch
          %357 = sbr.rel (%p355) target = $region40
        $region39: #{tpu_custom_call.1} parent=31 // pred_region
          %s358 = smul.u32 2, %s25
          %s360 = ssub.s32 512, 512
          %361 = vsyncadd %s351, %s360
          %s362 = smul.addr %s24, 8
          %s363 = sadd.s32 %s358, %s362
          %s364 = smul.addr %s363, 64
          %s365 = scalar_lea.hbm %s3, %s364
          %s366 = sshll.u32 %s354, 4
          %s367 = int_to_ptr.vmem [resolvable:$true] %s366
          %372 = dma.vmem_to_hbm [thread:$0]  %s367, 512, %s365, %s351, 128, 128, 8
        $region40: #{tpu_custom_call.1} parent=31 // pred_fallthru
          _
      $region32: #{tpu_custom_call.1} parent=5 // pred_fallthru
        _
      %p373 = scmp.le.s32.totalorder 2, %s15
      // Predicated region
      $region41: #{tpu_custom_call.1} parent=5 // pred_check
        %p374 = pneg %p373
      $region42: #{tpu_custom_call.1} parent=5 // pred_check_branch
        %376 = sbr.rel (%p374) target = $region44
      $region43: #{tpu_custom_call.1} parent=5 // pred_region
        %s377 = ssub.s32 %s15, 2
        // Predicated region
        $region45: #{tpu_custom_call.1} parent=43 // pred_check
          %p378 = pneg %p128
        $region46: #{tpu_custom_call.1} parent=43 // pred_check_branch
          %380 = sbr.rel (%p378) target = $region48
        $region47: #{tpu_custom_call.1} parent=43 // pred_region
          %s381 = sand.u32 %s113, 1
          %s382 = scalar_lea.sflag [#allocation4], %s381
          %s383 = sand.u32 %s113, 1
          %s384 = smul.addr %s383, 32
          %s385 = scalar_lea.vmem [#allocation5], %s384
          %386 = dma.done %s382, 512
        $region48: #{tpu_custom_call.1} parent=43 // pred_fallthru
          _
      $region44: #{tpu_custom_call.1} parent=5 // pred_fallthru
        _
    $region6: #{tpu_custom_call.1} parent=1 // loop_footer
      %s19 = sadd.s32 1, %s15
    $region7: #{tpu_custom_call.1} parent=1 // loop_footer_branch
      %14 = sbr.rel target = $region3
    $region8: #{tpu_custom_call.1} parent=1 // loop_exit
      _
    %387 = vsyncpa [#allocation3], 1
    %s388 = scalar_lea.sflag [#allocation3], 1
    %389 = vsyncpa %s388, 1
    %390 = vsyncpa [#allocation4], 1
    %s391 = scalar_lea.sflag [#allocation4], 1
    %392 = vsyncpa %s391, 1

</llo_original>
